<compile_context>
chip_gen: v7x
topology: tpu7x:2x2x1
jax: 0.10.0
libtpu: 0.0.40
codegen_flags: <defaults>
</compile_context>

<pallas_src>
from functools import partial

import jax
import jax.numpy as jnp
from jax.experimental import pallas as pl
from jax.experimental.pallas import tpu as pltpu

KH = KW = 3  # 3x3 conv, stride 1, padding 1


def _flows_kernel(x_ref, w_ref, b_ref, o_ref, *, w2):
    # x_ref: (1, d, c, L)        flat, padded frames of one batch element,
    #                            L = (h+2)*(w+2) + 2   (1 guard element per end)
    # w_ref: (2, 9*2c)           conv weights, tap-major / input-channel-minor
    # b_ref: (2, 1)              bias
    # o_ref: (1, 2, d-1, h*w2)   width-padded flows, lane-dense
    _, d, c, _ = x_ref.shape
    cin = 2 * c
    n_pairs = o_ref.shape[2]
    hw2 = o_ref.shape[3]

    w_flat = w_ref[...]                      # (2, 9*cin)  -- hoisted out of loops
    bias = b_ref[...]                        # (2, 1)

    for idx in range(n_pairs):               # static unroll over frame pairs
        cols = []
        for dy in range(KH):
            for dx in range(KW):
                s = dy * w2 + dx
                # both frames of the pair at this tap: (2, c, hw2) -> (2c, hw2)
                # (rows 0..c-1 = prev frame, c..2c-1 = cur frame, matching the
                #  torch.cat([prev, cur], 1) channel order of the weights)
                cols.append(
                    x_ref[0, idx:idx + 2, :, s:s + hw2].reshape(cin, hw2))
        patches = jnp.concatenate(cols, axis=0)               # (9*cin, hw2)
        acc = jnp.dot(w_flat, patches,
                      preferred_element_type=jnp.float32)     # (2, hw2)
        o_ref[0, :, idx, :] = (acc + bias).astype(o_ref.dtype)


def flows_gen(imgs, weight, bias):
    """imgs:   (b, c, d, h, w) float32  (PyTorch NCDHW)
       weight: (2, 2*c, 3, 3)  float32  (PyTorch OIHW)
       bias:   (2,)            float32
       returns (b, 2, d-1, h, w) float32 — same as FlowsGen.forward."""
    b, c, d, h, w = imgs.shape
    cin = 2 * c
    n_pairs = d - 1
    w2 = w + 2
    hw2 = h * w2
    L = (h + 2) * w2 + 2

    # ---- wrapper glue: single XLA transpose+pad of the input (no frame-pair
    # duplication, no output transpose).
    x = jnp.transpose(imgs, (0, 2, 1, 3, 4)).astype(jnp.float32)  # (b, d, c, h, w)
    x = jnp.pad(x, ((0, 0), (0, 0), (0, 0), (1, 1), (1, 1)))      # conv padding = 1
    x = x.reshape(b, d, c, (h + 2) * w2)                          # flatten spatial
    x = jnp.pad(x, ((0, 0), (0, 0), (0, 0), (1, 1)))              # flat guard elems

    # weights OIHW (2, 2c, 3, 3) -> (2, 9*2c): tap-major, input-channel-minor.
    w_flat = jnp.transpose(weight, (0, 2, 3, 1)).reshape(2, 9 * cin)
    w_flat = w_flat.astype(jnp.float32)
    b2 = bias.reshape(2, 1).astype(jnp.float32)

    flops = 2 * 2 * (9 * cin) * hw2 * n_pairs * b
    bytes_accessed = 4 * (b * d * c * L + 2 * 9 * cin + 2
                          + b * 2 * n_pairs * hw2)

    # TODO(synk): for large h*w or d, add a row-tile (1-row halo) / depth-chunk
    # grid axis so the per-step block stays within VMEM (esp. v7x's 64 MiB).
    out = pl.pallas_call(
        partial(_flows_kernel, w2=w2),
        out_shape=jax.ShapeDtypeStruct((b, 2, n_pairs, hw2), jnp.float32),
        grid=(b,),
        in_specs=[
            pl.BlockSpec((1, d, c, L), lambda i: (i, 0, 0, 0)),
            pl.BlockSpec((2, 9 * cin), lambda i: (0, 0)),
            pl.BlockSpec((2, 1), lambda i: (0, 0)),
        ],
        out_specs=pl.BlockSpec((1, 2, n_pairs, hw2), lambda i: (i, 0, 0, 0)),
        compiler_params=pltpu.CompilerParams(
            dimension_semantics=("parallel",)),
        cost_estimate=pl.CostEstimate(flops=flops, transcendentals=0,
                                      bytes_accessed=bytes_accessed),
    )(x, w_flat, b2)

    # drop the 2 width-pad columns; reshape only, no transpose.
    out = out.reshape(b, 2, n_pairs, h, w2)[..., 1:1 + w]
    return out


def _reference(imgs, weight, bias):
    """Pure-JAX reference matching FlowsGen.forward with the synthetic flownet."""
    b, c, d, h, w = imgs.shape
    outs = []
    for idx in range(d - 1):
        inp = jnp.concatenate([imgs[:, :, idx], imgs[:, :, idx + 1]], axis=1)
        flow = jax.lax.conv_general_dilated(
            inp, weight, window_strides=(1, 1), padding=((1, 1), (1, 1)),
            dimension_numbers=("NCHW", "OIHW", "NCHW"))
        flow = flow + bias[None, :, None, None]
        outs.append(flow[:, :, None])
    return jnp.concatenate(outs, axis=2)


if __name__ == "__main__":
    key = jax.random.PRNGKey(0)
    k1, k2, k3 = jax.random.split(key, 3)

    b, c, d, h, w = 2, 4, 4, 16, 16
    imgs = jax.random.normal(k1, (b, c, d, h, w), jnp.float32)
    weight = jax.random.normal(k2, (2, 2 * c, KH, KW), jnp.float32) * 0.1
    bias = jax.random.normal(k3, (2,), jnp.float32) * 0.1

    out = jax.block_until_ready(flows_gen(imgs, weight, bias))

    ref = _reference(imgs, weight, bias)
    assert out.shape == (b, 2, d - 1, h, w), out.shape
    err = float(jnp.max(jnp.abs(out - ref)))
    assert jnp.allclose(out, ref, atol=2e-4, rtol=2e-4), err

    print("KERNEL_OK")
</pallas_src>

<mosaic_0001>
module attributes {stable_mosaic.version = 11 : i64} {
  func.func @_flows_kernel(%arg0: i32, %arg1: memref<1x4x4x326xf32, #tpu.memory_space<vmem>>, %arg2: memref<2x72xf32, #tpu.memory_space<vmem>>, %arg3: memref<2x1xf32, #tpu.memory_space<vmem>>, %arg4: memref<1x2x3x288xf32, #tpu.memory_space<vmem>>) attributes {dimension_semantics = [#tpu.dimension_semantics<parallel>], iteration_bounds = array<i64: 2>, scalar_prefetch = 0 : i64, scratch_operands = 0 : i64, tpu.core_type = #tpu.core_type<tc>, window_params = [{transform_indices = @transform_0, window_bounds = array<i64: 1, 4, 4, 326>}, {pipeline_mode = #tpu.pipeline_mode<synchronous>, transform_indices = @transform_1, window_bounds = array<i64: 2, 72>}, {pipeline_mode = #tpu.pipeline_mode<synchronous>, transform_indices = @transform_2, window_bounds = array<i64: 2, 1>}, {transform_indices = @transform_3, window_bounds = array<i64: 1, 2, 3, 288>}]} {
    %c0 = arith.constant 0 : index
    %c0_0 = arith.constant 0 : index
    %0 = vector.load %arg2[%c0, %c0_0] : memref<2x72xf32, #tpu.memory_space<vmem>>, vector<2x72xf32>
    %c0_1 = arith.constant 0 : index
    %c0_2 = arith.constant 0 : index
    %1 = vector.load %arg3[%c0_1, %c0_2] : memref<2x1xf32, #tpu.memory_space<vmem>>, vector<2x1xf32>
    %c0_3 = arith.constant 0 : index
    %c0_4 = arith.constant 0 : index
    %c0_5 = arith.constant 0 : index
    %c0_6 = arith.constant 0 : index
    %2 = vector.load %arg1[%c0_3, %c0_4, %c0_5, %c0_6] : memref<1x4x4x326xf32, #tpu.memory_space<vmem>>, vector<1x2x4x288xf32>
    %3 = vector.shape_cast %2 : vector<1x2x4x288xf32> to vector<2x4x288xf32>
    %4 = vector.shape_cast %3 : vector<2x4x288xf32> to vector<8x288xf32>
    %c0_7 = arith.constant 0 : index
    %c0_8 = arith.constant 0 : index
    %c0_9 = arith.constant 0 : index
    %c1 = arith.constant 1 : index
    %5 = vector.load %arg1[%c0_7, %c0_8, %c0_9, %c1] : memref<1x4x4x326xf32, #tpu.memory_space<vmem>>, vector<1x2x4x288xf32>
    %6 = vector.shape_cast %5 : vector<1x2x4x288xf32> to vector<2x4x288xf32>
    %7 = vector.shape_cast %6 : vector<2x4x288xf32> to vector<8x288xf32>
    %c0_10 = arith.constant 0 : index
    %c0_11 = arith.constant 0 : index
    %c0_12 = arith.constant 0 : index
    %c2 = arith.constant 2 : index
    %8 = vector.load %arg1[%c0_10, %c0_11, %c0_12, %c2] : memref<1x4x4x326xf32, #tpu.memory_space<vmem>>, vector<1x2x4x288xf32>
    %9 = vector.shape_cast %8 : vector<1x2x4x288xf32> to vector<2x4x288xf32>
    %10 = vector.shape_cast %9 : vector<2x4x288xf32> to vector<8x288xf32>
    %c0_13 = arith.constant 0 : index
    %c0_14 = arith.constant 0 : index
    %c0_15 = arith.constant 0 : index
    %c18 = arith.constant 18 : index
    %11 = vector.load %arg1[%c0_13, %c0_14, %c0_15, %c18] : memref<1x4x4x326xf32, #tpu.memory_space<vmem>>, vector<1x2x4x288xf32>
    %12 = vector.shape_cast %11 : vector<1x2x4x288xf32> to vector<2x4x288xf32>
    %13 = vector.shape_cast %12 : vector<2x4x288xf32> to vector<8x288xf32>
    %c0_16 = arith.constant 0 : index
    %c0_17 = arith.constant 0 : index
    %c0_18 = arith.constant 0 : index
    %c19 = arith.constant 19 : index
    %14 = vector.load %arg1[%c0_16, %c0_17, %c0_18, %c19] : memref<1x4x4x326xf32, #tpu.memory_space<vmem>>, vector<1x2x4x288xf32>
    %15 = vector.shape_cast %14 : vector<1x2x4x288xf32> to vector<2x4x288xf32>
    %16 = vector.shape_cast %15 : vector<2x4x288xf32> to vector<8x288xf32>
    %c0_19 = arith.constant 0 : index
    %c0_20 = arith.constant 0 : index
    %c0_21 = arith.constant 0 : index
    %c20 = arith.constant 20 : index
    %17 = vector.load %arg1[%c0_19, %c0_20, %c0_21, %c20] : memref<1x4x4x326xf32, #tpu.memory_space<vmem>>, vector<1x2x4x288xf32>
    %18 = vector.shape_cast %17 : vector<1x2x4x288xf32> to vector<2x4x288xf32>
    %19 = vector.shape_cast %18 : vector<2x4x288xf32> to vector<8x288xf32>
    %c0_22 = arith.constant 0 : index
    %c0_23 = arith.constant 0 : index
    %c0_24 = arith.constant 0 : index
    %c36 = arith.constant 36 : index
    %20 = vector.load %arg1[%c0_22, %c0_23, %c0_24, %c36] : memref<1x4x4x326xf32, #tpu.memory_space<vmem>>, vector<1x2x4x288xf32>
    %21 = vector.shape_cast %20 : vector<1x2x4x288xf32> to vector<2x4x288xf32>
    %22 = vector.shape_cast %21 : vector<2x4x288xf32> to vector<8x288xf32>
    %c0_25 = arith.constant 0 : index
    %c0_26 = arith.constant 0 : index
    %c0_27 = arith.constant 0 : index
    %c37 = arith.constant 37 : index
    %23 = vector.load %arg1[%c0_25, %c0_26, %c0_27, %c37] : memref<1x4x4x326xf32, #tpu.memory_space<vmem>>, vector<1x2x4x288xf32>
    %24 = vector.shape_cast %23 : vector<1x2x4x288xf32> to vector<2x4x288xf32>
    %25 = vector.shape_cast %24 : vector<2x4x288xf32> to vector<8x288xf32>
    %c0_28 = arith.constant 0 : index
    %c0_29 = arith.constant 0 : index
    %c0_30 = arith.constant 0 : index
    %c38 = arith.constant 38 : index
    %26 = vector.load %arg1[%c0_28, %c0_29, %c0_30, %c38] : memref<1x4x4x326xf32, #tpu.memory_space<vmem>>, vector<1x2x4x288xf32>
    %27 = vector.shape_cast %26 : vector<1x2x4x288xf32> to vector<2x4x288xf32>
    %28 = vector.shape_cast %27 : vector<2x4x288xf32> to vector<8x288xf32>
    %29 = tpu.concatenate %4, %7, %10, %13, %16, %19, %22, %25, %28 in 0 : vector<8x288xf32>, vector<8x288xf32>, vector<8x288xf32>, vector<8x288xf32>, vector<8x288xf32>, vector<8x288xf32>, vector<8x288xf32>, vector<8x288xf32>, vector<8x288xf32> -> vector<72x288xf32>
    %cst = arith.constant dense<0.000000e+00> : vector<2x288xf32>
    %30 = tpu.matmul %0, %29, %cst {dimension_numbers = #tpu.dot_dimension_numbers<[1], [0], [0], [1], [0, 0, 1, 1], [], []>} : vector<2x72xf32>, vector<72x288xf32>, vector<2x288xf32> -> vector<2x288xf32>
    %31 = vector.broadcast %1 : vector<2x1xf32> to vector<2x288xf32>
    %32 = arith.addf %30, %31 : vector<2x288xf32>
    %c0_31 = arith.constant 0 : index
    %c0_32 = arith.constant 0 : index
    %c0_33 = arith.constant 0 : index
    %c0_34 = arith.constant 0 : index
    %33 = vector.load %arg4[%c0_31, %c0_32, %c0_33, %c0_34] : memref<1x2x3x288xf32, #tpu.memory_space<vmem>>, vector<1x2x1x288xf32>
    %34 = vector.shape_cast %33 : vector<1x2x1x288xf32> to vector<2x288xf32>
    %35 = vector.shape_cast %32 : vector<2x288xf32> to vector<1x2x1x288xf32>
    tpu.vector_store %arg4[%c0_31, %c0_32, %c0_33, %c0_34], %35 {strides = array<i32>} : memref<1x2x3x288xf32, #tpu.memory_space<vmem>>, vector<1x2x1x288xf32>,
    %c0_35 = arith.constant 0 : index
    %c1_36 = arith.constant 1 : index
    %c0_37 = arith.constant 0 : index
    %c0_38 = arith.constant 0 : index
    %36 = vector.load %arg1[%c0_35, %c1_36, %c0_37, %c0_38] : memref<1x4x4x326xf32, #tpu.memory_space<vmem>>, vector<1x2x4x288xf32>
    %37 = vector.shape_cast %36 : vector<1x2x4x288xf32> to vector<2x4x288xf32>
    %38 = vector.shape_cast %37 : vector<2x4x288xf32> to vector<8x288xf32>
    %c0_39 = arith.constant 0 : index
    %c1_40 = arith.constant 1 : index
    %c0_41 = arith.constant 0 : index
    %c1_42 = arith.constant 1 : index
    %39 = vector.load %arg1[%c0_39, %c1_40, %c0_41, %c1_42] : memref<1x4x4x326xf32, #tpu.memory_space<vmem>>, vector<1x2x4x288xf32>
    %40 = vector.shape_cast %39 : vector<1x2x4x288xf32> to vector<2x4x288xf32>
    %41 = vector.shape_cast %40 : vector<2x4x288xf32> to vector<8x288xf32>
    %c0_43 = arith.constant 0 : index
    %c1_44 = arith.constant 1 : index
    %c0_45 = arith.constant 0 : index
    %c2_46 = arith.constant 2 : index
    %42 = vector.load %arg1[%c0_43, %c1_44, %c0_45, %c2_46] : memref<1x4x4x326xf32, #tpu.memory_space<vmem>>, vector<1x2x4x288xf32>
    %43 = vector.shape_cast %42 : vector<1x2x4x288xf32> to vector<2x4x288xf32>
    %44 = vector.shape_cast %43 : vector<2x4x288xf32> to vector<8x288xf32>
    %c0_47 = arith.constant 0 : index
    %c1_48 = arith.constant 1 : index
    %c0_49 = arith.constant 0 : index
    %c18_50 = arith.constant 18 : index
    %45 = vector.load %arg1[%c0_47, %c1_48, %c0_49, %c18_50] : memref<1x4x4x326xf32, #tpu.memory_space<vmem>>, vector<1x2x4x288xf32>
    %46 = vector.shape_cast %45 : vector<1x2x4x288xf32> to vector<2x4x288xf32>
    %47 = vector.shape_cast %46 : vector<2x4x288xf32> to vector<8x288xf32>
    %c0_51 = arith.constant 0 : index
    %c1_52 = arith.constant 1 : index
    %c0_53 = arith.constant 0 : index
    %c19_54 = arith.constant 19 : index
    %48 = vector.load %arg1[%c0_51, %c1_52, %c0_53, %c19_54] : memref<1x4x4x326xf32, #tpu.memory_space<vmem>>, vector<1x2x4x288xf32>
    %49 = vector.shape_cast %48 : vector<1x2x4x288xf32> to vector<2x4x288xf32>
    %50 = vector.shape_cast %49 : vector<2x4x288xf32> to vector<8x288xf32>
    %c0_55 = arith.constant 0 : index
    %c1_56 = arith.constant 1 : index
    %c0_57 = arith.constant 0 : index
    %c20_58 = arith.constant 20 : index
    %51 = vector.load %arg1[%c0_55, %c1_56, %c0_57, %c20_58] : memref<1x4x4x326xf32, #tpu.memory_space<vmem>>, vector<1x2x4x288xf32>
    %52 = vector.shape_cast %51 : vector<1x2x4x288xf32> to vector<2x4x288xf32>
    %53 = vector.shape_cast %52 : vector<2x4x288xf32> to vector<8x288xf32>
    %c0_59 = arith.constant 0 : index
    %c1_60 = arith.constant 1 : index
    %c0_61 = arith.constant 0 : index
    %c36_62 = arith.constant 36 : index
    %54 = vector.load %arg1[%c0_59, %c1_60, %c0_61, %c36_62] : memref<1x4x4x326xf32, #tpu.memory_space<vmem>>, vector<1x2x4x288xf32>
    %55 = vector.shape_cast %54 : vector<1x2x4x288xf32> to vector<2x4x288xf32>
    %56 = vector.shape_cast %55 : vector<2x4x288xf32> to vector<8x288xf32>
    %c0_63 = arith.constant 0 : index
    %c1_64 = arith.constant 1 : index
    %c0_65 = arith.constant 0 : index
    %c37_66 = arith.constant 37 : index
    %57 = vector.load %arg1[%c0_63, %c1_64, %c0_65, %c37_66] : memref<1x4x4x326xf32, #tpu.memory_space<vmem>>, vector<1x2x4x288xf32>
    %58 = vector.shape_cast %57 : vector<1x2x4x288xf32> to vector<2x4x288xf32>
    %59 = vector.shape_cast %58 : vector<2x4x288xf32> to vector<8x288xf32>
    %c0_67 = arith.constant 0 : index
    %c1_68 = arith.constant 1 : index
    %c0_69 = arith.constant 0 : index
    %c38_70 = arith.constant 38 : index
    %60 = vector.load %arg1[%c0_67, %c1_68, %c0_69, %c38_70] : memref<1x4x4x326xf32, #tpu.memory_space<vmem>>, vector<1x2x4x288xf32>
    %61 = vector.shape_cast %60 : vector<1x2x4x288xf32> to vector<2x4x288xf32>
    %62 = vector.shape_cast %61 : vector<2x4x288xf32> to vector<8x288xf32>
    %63 = tpu.concatenate %38, %41, %44, %47, %50, %53, %56, %59, %62 in 0 : vector<8x288xf32>, vector<8x288xf32>, vector<8x288xf32>, vector<8x288xf32>, vector<8x288xf32>, vector<8x288xf32>, vector<8x288xf32>, vector<8x288xf32>, vector<8x288xf32> -> vector<72x288xf32>
    %cst_71 = arith.constant dense<0.000000e+00> : vector<2x288xf32>
    %64 = tpu.matmul %0, %63, %cst_71 {dimension_numbers = #tpu.dot_dimension_numbers<[1], [0], [0], [1], [0, 0, 1, 1], [], []>} : vector<2x72xf32>, vector<72x288xf32>, vector<2x288xf32> -> vector<2x288xf32>
    %65 = vector.broadcast %1 : vector<2x1xf32> to vector<2x288xf32>
    %66 = arith.addf %64, %65 : vector<2x288xf32>
    %c0_72 = arith.constant 0 : index
    %c0_73 = arith.constant 0 : index
    %c1_74 = arith.constant 1 : index
    %c0_75 = arith.constant 0 : index
    %67 = vector.load %arg4[%c0_72, %c0_73, %c1_74, %c0_75] : memref<1x2x3x288xf32, #tpu.memory_space<vmem>>, vector<1x2x1x288xf32>
    %68 = vector.shape_cast %67 : vector<1x2x1x288xf32> to vector<2x288xf32>
    %69 = vector.shape_cast %66 : vector<2x288xf32> to vector<1x2x1x288xf32>
    tpu.vector_store %arg4[%c0_72, %c0_73, %c1_74, %c0_75], %69 {strides = array<i32>} : memref<1x2x3x288xf32, #tpu.memory_space<vmem>>, vector<1x2x1x288xf32>,
    %c0_76 = arith.constant 0 : index
    %c2_77 = arith.constant 2 : index
    %c0_78 = arith.constant 0 : index
    %c0_79 = arith.constant 0 : index
    %70 = vector.load %arg1[%c0_76, %c2_77, %c0_78, %c0_79] : memref<1x4x4x326xf32, #tpu.memory_space<vmem>>, vector<1x2x4x288xf32>
    %71 = vector.shape_cast %70 : vector<1x2x4x288xf32> to vector<2x4x288xf32>
    %72 = vector.shape_cast %71 : vector<2x4x288xf32> to vector<8x288xf32>
    %c0_80 = arith.constant 0 : index
    %c2_81 = arith.constant 2 : index
    %c0_82 = arith.constant 0 : index
    %c1_83 = arith.constant 1 : index
    %73 = vector.load %arg1[%c0_80, %c2_81, %c0_82, %c1_83] : memref<1x4x4x326xf32, #tpu.memory_space<vmem>>, vector<1x2x4x288xf32>
    %74 = vector.shape_cast %73 : vector<1x2x4x288xf32> to vector<2x4x288xf32>
    %75 = vector.shape_cast %74 : vector<2x4x288xf32> to vector<8x288xf32>
    %c0_84 = arith.constant 0 : index
    %c2_85 = arith.constant 2 : index
    %c0_86 = arith.constant 0 : index
    %c2_87 = arith.constant 2 : index
    %76 = vector.load %arg1[%c0_84, %c2_85, %c0_86, %c2_87] : memref<1x4x4x326xf32, #tpu.memory_space<vmem>>, vector<1x2x4x288xf32>
    %77 = vector.shape_cast %76 : vector<1x2x4x288xf32> to vector<2x4x288xf32>
    %78 = vector.shape_cast %77 : vector<2x4x288xf32> to vector<8x288xf32>
    %c0_88 = arith.constant 0 : index
    %c2_89 = arith.constant 2 : index
    %c0_90 = arith.constant 0 : index
    %c18_91 = arith.constant 18 : index
    %79 = vector.load %arg1[%c0_88, %c2_89, %c0_90, %c18_91] : memref<1x4x4x326xf32, #tpu.memory_space<vmem>>, vector<1x2x4x288xf32>
    %80 = vector.shape_cast %79 : vector<1x2x4x288xf32> to vector<2x4x288xf32>
    %81 = vector.shape_cast %80 : vector<2x4x288xf32> to vector<8x288xf32>
    %c0_92 = arith.constant 0 : index
    %c2_93 = arith.constant 2 : index
    %c0_94 = arith.constant 0 : index
    %c19_95 = arith.constant 19 : index
    %82 = vector.load %arg1[%c0_92, %c2_93, %c0_94, %c19_95] : memref<1x4x4x326xf32, #tpu.memory_space<vmem>>, vector<1x2x4x288xf32>
    %83 = vector.shape_cast %82 : vector<1x2x4x288xf32> to vector<2x4x288xf32>
    %84 = vector.shape_cast %83 : vector<2x4x288xf32> to vector<8x288xf32>
    %c0_96 = arith.constant 0 : index
    %c2_97 = arith.constant 2 : index
    %c0_98 = arith.constant 0 : index
    %c20_99 = arith.constant 20 : index
    %85 = vector.load %arg1[%c0_96, %c2_97, %c0_98, %c20_99] : memref<1x4x4x326xf32, #tpu.memory_space<vmem>>, vector<1x2x4x288xf32>
    %86 = vector.shape_cast %85 : vector<1x2x4x288xf32> to vector<2x4x288xf32>
    %87 = vector.shape_cast %86 : vector<2x4x288xf32> to vector<8x288xf32>
    %c0_100 = arith.constant 0 : index
    %c2_101 = arith.constant 2 : index
    %c0_102 = arith.constant 0 : index
    %c36_103 = arith.constant 36 : index
    %88 = vector.load %arg1[%c0_100, %c2_101, %c0_102, %c36_103] : memref<1x4x4x326xf32, #tpu.memory_space<vmem>>, vector<1x2x4x288xf32>
    %89 = vector.shape_cast %88 : vector<1x2x4x288xf32> to vector<2x4x288xf32>
    %90 = vector.shape_cast %89 : vector<2x4x288xf32> to vector<8x288xf32>
    %c0_104 = arith.constant 0 : index
    %c2_105 = arith.constant 2 : index
    %c0_106 = arith.constant 0 : index
    %c37_107 = arith.constant 37 : index
    %91 = vector.load %arg1[%c0_104, %c2_105, %c0_106, %c37_107] : memref<1x4x4x326xf32, #tpu.memory_space<vmem>>, vector<1x2x4x288xf32>
    %92 = vector.shape_cast %91 : vector<1x2x4x288xf32> to vector<2x4x288xf32>
    %93 = vector.shape_cast %92 : vector<2x4x288xf32> to vector<8x288xf32>
    %c0_108 = arith.constant 0 : index
    %c2_109 = arith.constant 2 : index
    %c0_110 = arith.constant 0 : index
    %c38_111 = arith.constant 38 : index
    %94 = vector.load %arg1[%c0_108, %c2_109, %c0_110, %c38_111] : memref<1x4x4x326xf32, #tpu.memory_space<vmem>>, vector<1x2x4x288xf32>
    %95 = vector.shape_cast %94 : vector<1x2x4x288xf32> to vector<2x4x288xf32>
    %96 = vector.shape_cast %95 : vector<2x4x288xf32> to vector<8x288xf32>
    %97 = tpu.concatenate %72, %75, %78, %81, %84, %87, %90, %93, %96 in 0 : vector<8x288xf32>, vector<8x288xf32>, vector<8x288xf32>, vector<8x288xf32>, vector<8x288xf32>, vector<8x288xf32>, vector<8x288xf32>, vector<8x288xf32>, vector<8x288xf32> -> vector<72x288xf32>
    %cst_112 = arith.constant dense<0.000000e+00> : vector<2x288xf32>
    %98 = tpu.matmul %0, %97, %cst_112 {dimension_numbers = #tpu.dot_dimension_numbers<[1], [0], [0], [1], [0, 0, 1, 1], [], []>} : vector<2x72xf32>, vector<72x288xf32>, vector<2x288xf32> -> vector<2x288xf32>
    %99 = vector.broadcast %1 : vector<2x1xf32> to vector<2x288xf32>
    %100 = arith.addf %98, %99 : vector<2x288xf32>
    %c0_113 = arith.constant 0 : index
    %c0_114 = arith.constant 0 : index
    %c2_115 = arith.constant 2 : index
    %c0_116 = arith.constant 0 : index
    %101 = vector.load %arg4[%c0_113, %c0_114, %c2_115, %c0_116] : memref<1x2x3x288xf32, #tpu.memory_space<vmem>>, vector<1x2x1x288xf32>
    %102 = vector.shape_cast %101 : vector<1x2x1x288xf32> to vector<2x288xf32>
    %103 = vector.shape_cast %100 : vector<2x288xf32> to vector<1x2x1x288xf32>
    tpu.vector_store %arg4[%c0_113, %c0_114, %c2_115, %c0_116], %103 {strides = array<i32>} : memref<1x2x3x288xf32, #tpu.memory_space<vmem>>, vector<1x2x1x288xf32>,
    return
  }
  func.func @transform_0(%arg0: i32) -> (i32, i32, i32, i32) {
    %c0_i32 = arith.constant 0 : i32
    %c0_i32_0 = arith.constant 0 : i32
    %c0_i32_1 = arith.constant 0 : i32
    %c0_i32_2 = arith.constant 0 : i32
    return %arg0, %c0_i32, %c0_i32_0, %c0_i32_1 : i32, i32, i32, i32
  }
  func.func @transform_1(%arg0: i32) -> (i32, i32) {
    %c0_i32 = arith.constant 0 : i32
    %c0_i32_0 = arith.constant 0 : i32
    %c0_i32_1 = arith.constant 0 : i32
    return %c0_i32, %c0_i32_0 : i32, i32
  }
  func.func @transform_2(%arg0: i32) -> (i32, i32) {
    %c0_i32 = arith.constant 0 : i32
    %c0_i32_0 = arith.constant 0 : i32
    %c0_i32_1 = arith.constant 0 : i32
    return %c0_i32, %c0_i32_0 : i32, i32
  }
  func.func @transform_3(%arg0: i32) -> (i32, i32, i32, i32) {
    %c0_i32 = arith.constant 0 : i32
    %c0_i32_0 = arith.constant 0 : i32
    %c0_i32_1 = arith.constant 0 : i32
    %c0_i32_2 = arith.constant 0 : i32
    return %arg0, %c0_i32, %c0_i32_0, %c0_i32_1 : i32, i32, i32, i32
  }
}

</mosaic_0001>

<llo_original>
// kernel: tpu_custom_call.1
$region0: #{tpu_custom_call.1}
  #allocation0 [shape = 'u32[]', space=smem, size = 0x4, offset = 0x4, fixed_abs, tag = 'smem constant byte address 0x4 - core index']
  #allocation1 [shape = 'u32[144,128]{1,0:T(1,128)}', space=vmem, size = 0x12000, scoped, tag = 'internal scratch']
  %s0 = inlined_call_operand.hbm [shape: f32[2,4,4,326], index: 0, kind: input, shape index: {}]
  %s1 = inlined_call_operand.vmem [shape: f32[2,72], index: 1, kind: input, shape index: {}]
  %s2 = inlined_call_operand.vmem [shape: f32[2,1], index: 2, kind: input, shape index: {}]
  %s3 = inlined_call_operand.vmem [shape: f32[2,2,3,288], index: 3, kind: output, shape index: {}]
  %s4 = sld [smem:[#allocation0]]
  $region49: #{tpu_custom_call.1} parent=0
    _
  %s6 = ssub.s32 1, %s4
  %s7 = scalar_select 0, %s6, %s4
  $region1: #{tpu_custom_call.1} parent=0
    #allocation2 [shape = 'u8[49152]{0}', space=vmem, size = 0xc000, scoped, tag = 'input window, operand 0']
    #allocation3 [shape = 's32[2]{0}', space=sflag, size = 0x8, scoped, tag = 'scoped memory for tpu_custom_call.1']
    %8 = vsyncpa [#allocation3], 0
    %s9 = scalar_lea.sflag [#allocation3], 1
    %10 = vsyncpa %s9, 0
    loop: start=0, step=1, limit=4
    $region2: #{tpu_custom_call.1} parent=1 // loop_pre_header
      _
    $region3: #{tpu_custom_call.1} parent=1 // loop_header
      %s12 = sphi 0, %s16
      %p13 = scmp.ge.s32.totalorder %s12, 4
      %s22 = sphi 0, %s24
      %s25 = sphi 0, %s22
      %s26 = sphi 0, %s25
      %s42 = sphi 0, %s26
      %s46 = sphi 0, %s46
      %s48 = sphi 0, %s46
      %s49 = sphi 0, %s48
      %s63 = sphi 0, %s49
      %s67 = sphi 0, %s67
      %s69 = sphi 0, %s67
      %s70 = sphi 0, %s69
      %s84 = sphi 0, %s70
      %s90 = sphi 0, %s92
      %s93 = sphi 0, %s90
      %s94 = sphi 0, %s93
      %s110 = sphi 0, %s94
    $region4: #{tpu_custom_call.1} parent=1 // loop_header_branch
      %15 = sbr.rel (%p13) target = $region8
    $region5: #{tpu_custom_call.1} parent=1 // loop_body
      %s17 = ssub.s32 %s12, 1
      %s18 = ssub.s32 %s12, 2
      %s19 = sadd.s32 %s12, 1
      %s20 = ssub.s32 %s12, %s19
      %p21 = scmp.eq.s32.totalorder %s20, 0
      %s23 = sadd.s32 %s22, 1
      %s24 = scalar_select %p21, %s22, %s23
      %p27 = pneg %p21
      %p28 = scmp.eq.s32.totalorder %s12, 1
      %p29 = por %p27, %p28
      %p30 = scmp.ne.s32.totalorder %s22, %s25
      %p31 = scmp.eq.s32.totalorder %s12, 0
      %p32 = por %p30, %p31
      %p33 = scmp.ne.s32.totalorder %s22, %s25
      %p34 = scmp.eq.s32.totalorder %s17, 1
      %p35 = por %p33, %p34
      %p36 = scmp.ne.s32.totalorder %s25, %s26
      %p37 = scmp.eq.s32.totalorder %s17, 0
      %p38 = por %p36, %p37
      %p39 = scmp.ne.s32.totalorder %s25, %s26
      %p40 = scmp.eq.s32.totalorder %s18, 1
      %p41 = por %p39, %p40
      %p43 = scmp.ne.s32.totalorder %s26, %s42
      %p44 = scmp.eq.s32.totalorder %s18, 0
      %p45 = por %p43, %p44
      %s47 = sadd.s32 %s46, 1
      %p50 = scmp.eq.s32.totalorder %s12, 1
      %p51 = scmp.ne.s32.totalorder %s46, %s48
      %p52 = scmp.eq.s32.totalorder %s12, 0
      %p53 = por %p51, %p52
      %p54 = scmp.ne.s32.totalorder %s46, %s48
      %p55 = scmp.eq.s32.totalorder %s17, 1
      %p56 = por %p54, %p55
      %p57 = scmp.ne.s32.totalorder %s48, %s49
      %p58 = scmp.eq.s32.totalorder %s17, 0
      %p59 = por %p57, %p58
      %p60 = scmp.ne.s32.totalorder %s48, %s49
      %p61 = scmp.eq.s32.totalorder %s18, 1
      %p62 = por %p60, %p61
      %p64 = scmp.ne.s32.totalorder %s49, %s63
      %p65 = scmp.eq.s32.totalorder %s18, 0
      %p66 = por %p64, %p65
      %s68 = sadd.s32 %s67, 1
      %p71 = scmp.eq.s32.totalorder %s12, 1
      %p72 = scmp.ne.s32.totalorder %s67, %s69
      %p73 = scmp.eq.s32.totalorder %s12, 0
      %p74 = por %p72, %p73
      %p75 = scmp.ne.s32.totalorder %s67, %s69
      %p76 = scmp.eq.s32.totalorder %s17, 1
      %p77 = por %p75, %p76
      %p78 = scmp.ne.s32.totalorder %s69, %s70
      %p79 = scmp.eq.s32.totalorder %s17, 0
      %p80 = por %p78, %p79
      %p81 = scmp.ne.s32.totalorder %s69, %s70
      %p82 = scmp.eq.s32.totalorder %s18, 1
      %p83 = por %p81, %p82
      %p85 = scmp.ne.s32.totalorder %s70, %s84
      %p86 = scmp.eq.s32.totalorder %s18, 0
      %p87 = por %p85, %p86
      %s88 = ssub.s32 %s12, %s19
      %p89 = scmp.eq.s32.totalorder %s88, 0
      %s91 = sadd.s32 %s90, 1
      %s92 = scalar_select %p89, %s90, %s91
      %p95 = pneg %p89
      %p96 = scmp.eq.s32.totalorder %s12, 1
      %p97 = por %p95, %p96
      %p98 = scmp.ne.s32.totalorder %s90, %s93
      %p99 = scmp.eq.s32.totalorder %s12, 0
      %p100 = por %p98, %p99
      %p101 = scmp.ne.s32.totalorder %s90, %s93
      %p102 = scmp.eq.s32.totalorder %s17, 1
      %p103 = por %p101, %p102
      %p104 = scmp.ne.s32.totalorder %s93, %s94
      %p105 = scmp.eq.s32.totalorder %s17, 0
      %p106 = por %p104, %p105
      %p107 = scmp.ne.s32.totalorder %s93, %s94
      %p108 = scmp.eq.s32.totalorder %s18, 1
      %p109 = por %p107, %p108
      %p111 = scmp.ne.s32.totalorder %s94, %s110
      %p112 = scmp.eq.s32.totalorder %s18, 0
      %p113 = por %p111, %p112
      %p114 = scmp.le.s32.totalorder 1, %s12
      %p115 = scmp.lt.s32.totalorder %s12, 3
      %p116 = pnand %p114, %p115
      %p117 = pneg %p116
      // Predicated region
      $region9: #{tpu_custom_call.1} parent=5 // pred_check
        _
      $region10: #{tpu_custom_call.1} parent=5 // pred_check_branch
        %119 = sbr.rel (%p116) target = $region12
      $region11: #{tpu_custom_call.1} parent=5 // pred_region
        %s120 = ssub.s32 %s12, 1
        // Predicated region
        $region13: #{tpu_custom_call.1} parent=11 // pred_check
          %p121 = pneg %p59
        $region14: #{tpu_custom_call.1} parent=11 // pred_check_branch
          %123 = sbr.rel (%p121) target = $region16
        $region15: #{tpu_custom_call.1} parent=11 // pred_region
          _
        $region16: #{tpu_custom_call.1} parent=11 // pred_fallthru
          _
        // Predicated region
        $region17: #{tpu_custom_call.1} parent=11 // pred_check
          %p124 = pneg %p80
        $region18: #{tpu_custom_call.1} parent=11 // pred_check_branch
          %126 = sbr.rel (%p124) target = $region20
        $region19: #{tpu_custom_call.1} parent=11 // pred_region
          _
        $region20: #{tpu_custom_call.1} parent=11 // pred_fallthru
          _
      $region12: #{tpu_custom_call.1} parent=5 // pred_fallthru
        _
      %p127 = scmp.lt.s32.totalorder %s12, 2
      // Predicated region
      $region21: #{tpu_custom_call.1} parent=5 // pred_check
        %p128 = pneg %p127
      $region22: #{tpu_custom_call.1} parent=5 // pred_check_branch
        %130 = sbr.rel (%p128) target = $region24
      $region23: #{tpu_custom_call.1} parent=5 // pred_region
        // Predicated region
        $region25: #{tpu_custom_call.1} parent=23 // pred_check
          %p131 = pneg %p32
        $region26: #{tpu_custom_call.1} parent=23 // pred_check_branch
          %133 = sbr.rel (%p131) target = $region28
        $region27: #{tpu_custom_call.1} parent=23 // pred_region
          %s134 = sand.u32 %s22, 1
          %s135 = scalar_lea.sflag [#allocation3], %s134
          %s136 = sand.u32 %s22, 1
          %s137 = smul.addr %s136, 48
          %s138 = scalar_lea.vmem [#allocation2], %s137
          %s140 = ssub.s32 768, 768
          %141 = vsyncadd %s135, %s140
          %s142 = smul.addr %s12, 12
          %s143 = smul.addr %s142, 64
          %s144 = scalar_lea.hbm %s0, %s143
          %s145 = sshll.u32 %s138, 4
          %s146 = int_to_ptr.vmem [resolvable:$true] %s145
          %151 = dma.hbm_to_vmem [thread:$0]  %s144, 768, %s146, %s135, 192, 192, 12
        $region28: #{tpu_custom_call.1} parent=23 // pred_fallthru
          _
      $region24: #{tpu_custom_call.1} parent=5 // pred_fallthru
        _
      %p152 = scmp.le.s32.totalorder 1, %s12
      %p153 = scmp.lt.s32.totalorder %s12, 3
      %p154 = pnand %p152, %p153
      %p155 = pneg %p154
      // Predicated region
      $region29: #{tpu_custom_call.1} parent=5 // pred_check
        _
      $region30: #{tpu_custom_call.1} parent=5 // pred_check_branch
        %157 = sbr.rel (%p154) target = $region32
      $region31: #{tpu_custom_call.1} parent=5 // pred_region
        %s158 = ssub.s32 %s12, 1
        %s159 = sand.u32 %s25, 1
        %s160 = scalar_lea.sflag [#allocation3], %s159
        %s161 = sand.u32 %s25, 1
        %s162 = smul.addr %s161, 48
        %s163 = scalar_lea.vmem [#allocation2], %s162
        // Predicated region
        $region33: #{tpu_custom_call.1} parent=31 // pred_check
          %p164 = pneg %p38
        $region34: #{tpu_custom_call.1} parent=31 // pred_check_branch
          %166 = sbr.rel (%p164) target = $region36
        $region35: #{tpu_custom_call.1} parent=31 // pred_region
          %167 = dma.done %s160, 768
        $region36: #{tpu_custom_call.1} parent=31 // pred_fallthru
          _
        %s168 = sand.u32 %s25, 1
        %s169 = scalar_lea.sflag [#allocation3], %s168
        %s170 = sand.u32 %s25, 1
        %s171 = smul.addr %s170, 48
        %s172 = scalar_lea.vmem [#allocation2], %s171
        %p173 = pneg %p38
        %p174 = pneg %p35
        %p175 = pneg %p59
        %p176 = pneg %p56
        %p177 = pneg %p80
        %p178 = pneg %p77
        %p179 = pneg %p106
        %p180 = pneg %p103
        %p181 = scmp.lt.s32.totalorder %s17, 1
        %s182 = scalar_select %p181, %s17, 1
        %s183 = smul.addr %s182, 6
        %s184 = smul.addr %s183, 4
        %s185 = scalar_lea.vmem %s3, %s184
        %p186 = scmp.lt.s32.totalorder %s17, 1
        %s187 = scalar_select %p186, %s17, 1
        %s188 = smul.addr %s187, 6
        %s189 = smul.addr %s188, 4
        %s190 = scalar_lea.vmem %s3, %s189
        %v191 = vld [vmem:[%s1] sm:$0x3]
        %v192 = vld [vmem:[%s2] sm:$0x3]
        %v193 = vld [vmem:[%s163] sm:$0xff]
        %v194 = vld [vmem:[%s163 + $0x8] sm:$0xf]
        %v195 = vld [vmem:[%s163 + $0xc] sm:$0xff]
        %v196 = vld [vmem:[%s163 + $0x14] sm:$0xf]
        %v201 = vcombine.low %v193, %v195
        %v202 = vcombine.high %v193, %v195
        %v203 = vcombine.low %v194, %v196
        %207 = vrot.lane.b32.xlu0 %v201, 127
        %v208 = vpop.permute.xlu0 %207
        %209 = vrot.lane.b32.xlu0 %v202, 127
        %v210 = vpop.permute.xlu0 %209
        %211 = vrot.lane.b32.xlu0 %v203, 127
        %v212 = vpop.permute.xlu0 %211
        %vm213 = vcmask 1039360
        %v214 = vsel %vm213, %v208, %v210
        %v215 = vsel %vm213, %v210, %v212
        %219 = vrot.lane.b32.xlu0 %v201, 126
        %v220 = vpop.permute.xlu0 %219
        %221 = vrot.lane.b32.xlu0 %v202, 126
        %v222 = vpop.permute.xlu0 %221
        %223 = vrot.lane.b32.xlu0 %v203, 126
        %v224 = vpop.permute.xlu0 %223
        %vm225 = vcmask 1031168
        %v226 = vsel %vm225, %v220, %v222
        %v227 = vsel %vm225, %v222, %v224
        %231 = vrot.lane.b32.xlu0 %v201, 110
        %v232 = vpop.permute.xlu0 %231
        %233 = vrot.lane.b32.xlu0 %v202, 110
        %v234 = vpop.permute.xlu0 %233
        %235 = vrot.lane.b32.xlu0 %v203, 110
        %v236 = vpop.permute.xlu0 %235
        %vm237 = vcmask 900096
        %v238 = vsel %vm237, %v232, %v234
        %v239 = vsel %vm237, %v234, %v236
        %243 = vrot.lane.b32.xlu0 %v201, 109
        %v244 = vpop.permute.xlu0 %243
        %245 = vrot.lane.b32.xlu0 %v202, 109
        %v246 = vpop.permute.xlu0 %245
        %247 = vrot.lane.b32.xlu0 %v203, 109
        %v248 = vpop.permute.xlu0 %247
        %vm249 = vcmask 891904
        %v250 = vsel %vm249, %v244, %v246
        %v251 = vsel %vm249, %v246, %v248
        %255 = vrot.lane.b32.xlu0 %v201, 108
        %v256 = vpop.permute.xlu0 %255
        %257 = vrot.lane.b32.xlu0 %v202, 108
        %v258 = vpop.permute.xlu0 %257
        %259 = vrot.lane.b32.xlu0 %v203, 108
        %v260 = vpop.permute.xlu0 %259
        %vm261 = vcmask 883712
        %v262 = vsel %vm261, %v256, %v258
        %v263 = vsel %vm261, %v258, %v260
        %267 = vrot.lane.b32.xlu0 %v201, 92
        %v268 = vpop.permute.xlu0 %267
        %269 = vrot.lane.b32.xlu0 %v202, 92
        %v270 = vpop.permute.xlu0 %269
        %271 = vrot.lane.b32.xlu0 %v203, 92
        %v272 = vpop.permute.xlu0 %271
        %vm273 = vcmask 752640
        %v274 = vsel %vm273, %v268, %v270
        %v275 = vsel %vm273, %v270, %v272
        %279 = vrot.lane.b32.xlu0 %v201, 91
        %v280 = vpop.permute.xlu0 %279
        %281 = vrot.lane.b32.xlu0 %v202, 91
        %v282 = vpop.permute.xlu0 %281
        %283 = vrot.lane.b32.xlu0 %v203, 91
        %v284 = vpop.permute.xlu0 %283
        %vm285 = vcmask 744448
        %v286 = vsel %vm285, %v280, %v282
        %v287 = vsel %vm285, %v282, %v284
        %291 = vrot.lane.b32.xlu0 %v201, 90
        %v292 = vpop.permute.xlu0 %291
        %293 = vrot.lane.b32.xlu0 %v202, 90
        %v294 = vpop.permute.xlu0 %293
        %295 = vrot.lane.b32.xlu0 %v203, 90
        %v296 = vpop.permute.xlu0 %295
        %vm297 = vcmask 736256
        %v298 = vsel %vm297, %v292, %v294
        %v299 = vsel %vm297, %v294, %v296
        %304 = vset.pattern.permute.xlu0 0
        %305 = vperm.xlu0 %304, %v192
        %v306 = vpop.permute.xlu0 %305
        %vm308 = vcmask 588800
        %v310 = vsel %vm308, %v191, 0
        %312 = vmatprep.subr.mxu0 %v202
        %313 = vmatpush1.msra.mxu0 %v201
        %314 = vmatprep.subr.mxu0 %v215
        %315 = vmatpush1.msra.mxu0 %v214
        %316 = vmatprep.subr.mxu0 %v227
        %317 = vmatpush1.msra.mxu0 %v226
        %318 = vmatprep.subr.mxu0 %v239
        %319 = vmatpush1.msra.mxu0 %v238
        %320 = vmatprep.subr.mxu0 %v251
        %321 = vmatpush1.msra.mxu0 %v250
        %322 = vmatprep.subr.mxu0 %v263
        %323 = vmatpush1.msra.mxu0 %v262
        %324 = vmatprep.subr.mxu0 %v275
        %325 = vmatpush1.msra.mxu0 %v274
        %326 = vmatprep.subr.mxu0 %v287
        %327 = vmatpush1.msra.mxu0 %v286
        %328 = vmatprep.subr.mxu0 %v299
        %329 = vmatpush1.msra.mxu0 %v298
        %330 = vmatprep.subr.mxu0 0.0
        %331 = vmatpush1.msra.mxu0 0.0
        %332 = vmatprep.subr.mxu0 0.0
        %333 = vmatpush1.msra.mxu0 0.0
        %334 = vmatprep.subr.mxu0 0.0
        %335 = vmatpush1.msra.mxu0 0.0
        %336 = vmatprep.subr.mxu0 0.0
        %337 = vmatpush1.msra.mxu0 0.0
        %338 = vmatprep.subr.mxu0 0.0
        %339 = vmatpush1.msra.mxu0 0.0
        %340 = vmatprep.subr.mxu0 0.0
        %341 = vmatpush1.msra.mxu0 0.0
        %342 = vmatprep.subr.mxu0 0.0
        %343 = vmatpush1.msra.mxu0 0.0
        %344 = vmatprep.subr.mxu0 0.0
        %345 = vmatpush1.msra.mxu0 0.0
        %346 = vmatprep.subr.mxu0 0.0
        %347 = vmatpush1.msra.mxu0 0.0
        %348 = vmatprep.subr.mxu0 0.0
        %349 = vmatpush1.msra.mxu0 0.0
        %350 = vmatprep.subr.mxu0 0.0
        %351 = vmatpush1.msra.mxu0 0.0
        %352 = vmatprep.subr.mxu0 0.0
        %353 = vmatpush1.msra.mxu0 0.0
        %354 = vmatprep.subr.mxu0 0.0
        %355 = vmatpush1.msra.mxu0 0.0
        %356 = vmatprep.subr.mxu0 0.0
        %357 = vmatpush1.msra.mxu0 0.0
        %358 = vmatprep.subr.mxu0 0.0
        %359 = vmatpush1.msra.mxu0 0.0
        %360 = vmatprep.subr.mxu0 0.0
        %361 = vmatpush1.msra.mxu0 0.0
        %362 = vmatprep.subr.mxu0 0.0
        %363 = vmatpush1.msra.mxu0 0.0
        %364 = vmatprep.subr.mxu0 0.0
        %365 = vmatpush1.msra.mxu0 0.0
        %366 = vmatprep.subr.mxu0 0.0
        %367 = vmatpush1.msra.mxu0 0.0
        %368 = vmatprep.subr.mxu0 0.0
        %369 = vmatpush1.msra.mxu0 0.0
        %370 = vmatprep.subr.mxu0 0.0
        %371 = vmatpush1.msra.mxu0 0.0
        %372 = vmatprep.subr.mxu0 0.0
        %373 = vmatpush1.msra.mxu0 0.0
        %374 = vmatprep.subr.mxu0 0.0
        %375 = vmatpush1.msra.mxu0 0.0
        %376 = vmatprep.mubr.f32.mxu0 0.0
        %377 = vmatmul.mubr.f32.gmra.mrb[0].mxu0 %v310
        %v378 = vpop.f32.mrb[0].mxu0
        %v379 = vadd.f32 %v306, %v378
        %v380 = vpop.f32.mrb[0].mxu0
        %v381 = vadd.f32 %v306, %v380
        %382 = vdwg.mxu0
        %383 = vmatprep.subr.mxu0 0.0
        %384 = vmatpush1.msra.mxu0 %v203
        %385 = vmatprep.subr.mxu0 0.0
        %386 = vmatpush1.msra.mxu0 %v212
        %387 = vmatprep.subr.mxu0 0.0
        %388 = vmatpush1.msra.mxu0 %v224
        %389 = vmatprep.subr.mxu0 0.0
        %390 = vmatpush1.msra.mxu0 %v236
        %391 = vmatprep.subr.mxu0 0.0
        %392 = vmatpush1.msra.mxu0 %v248
        %393 = vmatprep.subr.mxu0 0.0
        %394 = vmatpush1.msra.mxu0 %v260
        %395 = vmatprep.subr.mxu0 0.0
        %396 = vmatpush1.msra.mxu0 %v272
        %397 = vmatprep.subr.mxu0 0.0
        %398 = vmatpush1.msra.mxu0 %v284
        %399 = vmatprep.subr.mxu0 0.0
        %400 = vmatpush1.msra.mxu0 %v296
        %401 = vmatprep.subr.mxu0 0.0
        %402 = vmatpush1.msra.mxu0 0.0
        %403 = vmatprep.subr.mxu0 0.0
        %404 = vmatpush1.msra.mxu0 0.0
        %405 = vmatprep.subr.mxu0 0.0
        %406 = vmatpush1.msra.mxu0 0.0
        %407 = vmatprep.subr.mxu0 0.0
        %408 = vmatpush1.msra.mxu0 0.0
        %409 = vmatprep.subr.mxu0 0.0
        %410 = vmatpush1.msra.mxu0 0.0
        %411 = vmatprep.subr.mxu0 0.0
        %412 = vmatpush1.msra.mxu0 0.0
        %413 = vmatprep.subr.mxu0 0.0
        %414 = vmatpush1.msra.mxu0 0.0
        %415 = vmatprep.subr.mxu0 0.0
        %416 = vmatpush1.msra.mxu0 0.0
        %417 = vmatprep.subr.mxu0 0.0
        %418 = vmatpush1.msra.mxu0 0.0
        %419 = vmatprep.subr.mxu0 0.0
        %420 = vmatpush1.msra.mxu0 0.0
        %421 = vmatprep.subr.mxu0 0.0
        %422 = vmatpush1.msra.mxu0 0.0
        %423 = vmatprep.subr.mxu0 0.0
        %424 = vmatpush1.msra.mxu0 0.0
        %425 = vmatprep.subr.mxu0 0.0
        %426 = vmatpush1.msra.mxu0 0.0
        %427 = vmatprep.subr.mxu0 0.0
        %428 = vmatpush1.msra.mxu0 0.0
        %429 = vmatprep.subr.mxu0 0.0
        %430 = vmatpush1.msra.mxu0 0.0
        %431 = vmatprep.subr.mxu0 0.0
        %432 = vmatpush1.msra.mxu0 0.0
        %433 = vmatprep.subr.mxu0 0.0
        %434 = vmatpush1.msra.mxu0 0.0
        %435 = vmatprep.subr.mxu0 0.0
        %436 = vmatpush1.msra.mxu0 0.0
        %437 = vmatprep.subr.mxu0 0.0
        %438 = vmatpush1.msra.mxu0 0.0
        %439 = vmatprep.subr.mxu0 0.0
        %440 = vmatpush1.msra.mxu0 0.0
        %441 = vmatprep.subr.mxu0 0.0
        %442 = vmatpush1.msra.mxu0 0.0
        %443 = vmatprep.subr.mxu0 0.0
        %444 = vmatpush1.msra.mxu0 0.0
        %445 = vmatprep.subr.mxu0 0.0
        %446 = vmatpush1.msra.mxu0 0.0
        %447 = vmatprep.mubr.f32.mxu0 0.0
        %448 = vmatmul.mubr.f32.gmra.mrb[0].mxu0 %v310
        %v449 = vpop.f32.mrb[0].mxu0
        %v450 = vadd.f32 %v306, %v449
        %v451 = vpop.f32.mrb[0].mxu0
        %452 = vdwg.mxu0
        %v456 = vcombine.low %v379, %v381
        %v458 = vunpack.c.l.s4 1966171168
        %v459 = vunpack.c.0.s8 %v458
        %v460 = vlaneseq
        %v461 = vshrl.u32 %v460, 7
        %v462 = vsub.s32 %v459, %v461
        %v463 = vrot.slane %v456, %v462
        %v465 = vunpack.c.l.s4 1966171168
        %v466 = vunpack.c.0.s8 %v465
        %v467 = vlaneseq
        %v468 = vshrl.u32 %v467, 7
        %v469 = vsub.s32 %v466, %v468
        %v470 = vrot.slane %v450, %v469
        %v471 = vcombine.low %v463, %v470
        %v472 = vcombine.high %v463, %v470
        %v474 = vunpack.c.l.s4 1966171168
        %v475 = vunpack.c.0.s8 %v474
        %v476 = vlaneseq
        %v477 = vshrl.u32 %v476, 7
        %v478 = vsub.s32 %v475, %v477
        %v479 = vrot.slane %v471, %v478
        %v481 = vunpack.c.l.s4 1966171168
        %v482 = vunpack.c.0.s8 %v481
        %v483 = vlaneseq
        %v484 = vshrl.u32 %v483, 7
        %v485 = vsub.s32 %v482, %v484
        %v486 = vrot.slane %v472, %v485
        %v489 = vlaneseq
        %vm490 = vcmp.ge.s32.totalorder %v489, 0
        %vm491 = vcmp.lt.s32.totalorder %v489, 288
        %vm492 = vmand %vm490, %vm491
        %493 = vst.msk [vmem:[%s190] ss:$4 sm:$0x7] %vm492, %v479
        %s494 = scalar_lea.vmem %s190, 12
        %495 = vst.msk [vmem:[%s494] ss:$4 sm:$0x7] %vm492, %v486
        %s496 = scalar_lea.vmem %s163, 12 [#allocation2]
        %v497 = vld [vmem:[%s496] sm:$0xff]
        %v498 = vld [vmem:[%s496 + $0x8] sm:$0xf]
        %v499 = vld [vmem:[%s496 + $0xc] sm:$0xff]
        %v500 = vld [vmem:[%s496 + $0x14] sm:$0xf]
        %v505 = vcombine.low %v497, %v499
        %v506 = vcombine.high %v497, %v499
        %v507 = vcombine.low %v498, %v500
        %511 = vrot.lane.b32.xlu0 %v505, 127
        %v512 = vpop.permute.xlu0 %511
        %513 = vrot.lane.b32.xlu0 %v506, 127
        %v514 = vpop.permute.xlu0 %513
        %515 = vrot.lane.b32.xlu0 %v507, 127
        %v516 = vpop.permute.xlu0 %515
        %v517 = vsel %vm213, %v512, %v514
        %v518 = vsel %vm213, %v514, %v516
        %522 = vrot.lane.b32.xlu0 %v505, 126
        %v523 = vpop.permute.xlu0 %522
        %524 = vrot.lane.b32.xlu0 %v506, 126
        %v525 = vpop.permute.xlu0 %524
        %526 = vrot.lane.b32.xlu0 %v507, 126
        %v527 = vpop.permute.xlu0 %526
        %v528 = vsel %vm225, %v523, %v525
        %v529 = vsel %vm225, %v525, %v527
        %533 = vrot.lane.b32.xlu0 %v505, 110
        %v534 = vpop.permute.xlu0 %533
        %535 = vrot.lane.b32.xlu0 %v506, 110
        %v536 = vpop.permute.xlu0 %535
        %537 = vrot.lane.b32.xlu0 %v507, 110
        %v538 = vpop.permute.xlu0 %537
        %v539 = vsel %vm237, %v534, %v536
        %v540 = vsel %vm237, %v536, %v538
        %544 = vrot.lane.b32.xlu0 %v505, 109
        %v545 = vpop.permute.xlu0 %544
        %546 = vrot.lane.b32.xlu0 %v506, 109
        %v547 = vpop.permute.xlu0 %546
        %548 = vrot.lane.b32.xlu0 %v507, 109
        %v549 = vpop.permute.xlu0 %548
        %v550 = vsel %vm249, %v545, %v547
        %v551 = vsel %vm249, %v547, %v549
        %555 = vrot.lane.b32.xlu0 %v505, 108
        %v556 = vpop.permute.xlu0 %555
        %557 = vrot.lane.b32.xlu0 %v506, 108
        %v558 = vpop.permute.xlu0 %557
        %559 = vrot.lane.b32.xlu0 %v507, 108
        %v560 = vpop.permute.xlu0 %559
        %v561 = vsel %vm261, %v556, %v558
        %v562 = vsel %vm261, %v558, %v560
        %566 = vrot.lane.b32.xlu0 %v505, 92
        %v567 = vpop.permute.xlu0 %566
        %568 = vrot.lane.b32.xlu0 %v506, 92
        %v569 = vpop.permute.xlu0 %568
        %570 = vrot.lane.b32.xlu0 %v507, 92
        %v571 = vpop.permute.xlu0 %570
        %v572 = vsel %vm273, %v567, %v569
        %v573 = vsel %vm273, %v569, %v571
        %577 = vrot.lane.b32.xlu0 %v505, 91
        %v578 = vpop.permute.xlu0 %577
        %579 = vrot.lane.b32.xlu0 %v506, 91
        %v580 = vpop.permute.xlu0 %579
        %581 = vrot.lane.b32.xlu0 %v507, 91
        %v582 = vpop.permute.xlu0 %581
        %v583 = vsel %vm285, %v578, %v580
        %v584 = vsel %vm285, %v580, %v582
        %588 = vrot.lane.b32.xlu0 %v505, 90
        %v589 = vpop.permute.xlu0 %588
        %590 = vrot.lane.b32.xlu0 %v506, 90
        %v591 = vpop.permute.xlu0 %590
        %592 = vrot.lane.b32.xlu0 %v507, 90
        %v593 = vpop.permute.xlu0 %592
        %v594 = vsel %vm297, %v589, %v591
        %v595 = vsel %vm297, %v591, %v593
        %599 = vmatprep.subr.mxu0 %v506
        %600 = vmatpush1.msra.mxu0 %v505
        %601 = vmatprep.subr.mxu0 %v518
        %602 = vmatpush1.msra.mxu0 %v517
        %603 = vmatprep.subr.mxu0 %v529
        %604 = vmatpush1.msra.mxu0 %v528
        %605 = vmatprep.subr.mxu0 %v540
        %606 = vmatpush1.msra.mxu0 %v539
        %607 = vmatprep.subr.mxu0 %v551
        %608 = vmatpush1.msra.mxu0 %v550
        %609 = vmatprep.subr.mxu0 %v562
        %610 = vmatpush1.msra.mxu0 %v561
        %611 = vmatprep.subr.mxu0 %v573
        %612 = vmatpush1.msra.mxu0 %v572
        %613 = vmatprep.subr.mxu0 %v584
        %614 = vmatpush1.msra.mxu0 %v583
        %615 = vmatprep.subr.mxu0 %v595
        %616 = vmatpush1.msra.mxu0 %v594
        %617 = vmatprep.subr.mxu0 0.0
        %618 = vmatpush1.msra.mxu0 0.0
        %619 = vmatprep.subr.mxu0 0.0
        %620 = vmatpush1.msra.mxu0 0.0
        %621 = vmatprep.subr.mxu0 0.0
        %622 = vmatpush1.msra.mxu0 0.0
        %623 = vmatprep.subr.mxu0 0.0
        %624 = vmatpush1.msra.mxu0 0.0
        %625 = vmatprep.subr.mxu0 0.0
        %626 = vmatpush1.msra.mxu0 0.0
        %627 = vmatprep.subr.mxu0 0.0
        %628 = vmatpush1.msra.mxu0 0.0
        %629 = vmatprep.subr.mxu0 0.0
        %630 = vmatpush1.msra.mxu0 0.0
        %631 = vmatprep.subr.mxu0 0.0
        %632 = vmatpush1.msra.mxu0 0.0
        %633 = vmatprep.subr.mxu0 0.0
        %634 = vmatpush1.msra.mxu0 0.0
        %635 = vmatprep.subr.mxu0 0.0
        %636 = vmatpush1.msra.mxu0 0.0
        %637 = vmatprep.subr.mxu0 0.0
        %638 = vmatpush1.msra.mxu0 0.0
        %639 = vmatprep.subr.mxu0 0.0
        %640 = vmatpush1.msra.mxu0 0.0
        %641 = vmatprep.subr.mxu0 0.0
        %642 = vmatpush1.msra.mxu0 0.0
        %643 = vmatprep.subr.mxu0 0.0
        %644 = vmatpush1.msra.mxu0 0.0
        %645 = vmatprep.subr.mxu0 0.0
        %646 = vmatpush1.msra.mxu0 0.0
        %647 = vmatprep.subr.mxu0 0.0
        %648 = vmatpush1.msra.mxu0 0.0
        %649 = vmatprep.subr.mxu0 0.0
        %650 = vmatpush1.msra.mxu0 0.0
        %651 = vmatprep.subr.mxu0 0.0
        %652 = vmatpush1.msra.mxu0 0.0
        %653 = vmatprep.subr.mxu0 0.0
        %654 = vmatpush1.msra.mxu0 0.0
        %655 = vmatprep.subr.mxu0 0.0
        %656 = vmatpush1.msra.mxu0 0.0
        %657 = vmatprep.subr.mxu0 0.0
        %658 = vmatpush1.msra.mxu0 0.0
        %659 = vmatprep.subr.mxu0 0.0
        %660 = vmatpush1.msra.mxu0 0.0
        %661 = vmatprep.subr.mxu0 0.0
        %662 = vmatpush1.msra.mxu0 0.0
        %663 = vmatprep.mubr.f32.mxu0 0.0
        %664 = vmatmul.mubr.f32.gmra.mrb[0].mxu0 %v310
        %v665 = vpop.f32.mrb[0].mxu0
        %v666 = vadd.f32 %v306, %v665
        %v667 = vpop.f32.mrb[0].mxu0
        %v668 = vadd.f32 %v306, %v667
        %669 = vdwg.mxu0
        %670 = vmatprep.subr.mxu0 0.0
        %671 = vmatpush1.msra.mxu0 %v507
        %672 = vmatprep.subr.mxu0 0.0
        %673 = vmatpush1.msra.mxu0 %v516
        %674 = vmatprep.subr.mxu0 0.0
        %675 = vmatpush1.msra.mxu0 %v527
        %676 = vmatprep.subr.mxu0 0.0
        %677 = vmatpush1.msra.mxu0 %v538
        %678 = vmatprep.subr.mxu0 0.0
        %679 = vmatpush1.msra.mxu0 %v549
        %680 = vmatprep.subr.mxu0 0.0
        %681 = vmatpush1.msra.mxu0 %v560
        %682 = vmatprep.subr.mxu0 0.0
        %683 = vmatpush1.msra.mxu0 %v571
        %684 = vmatprep.subr.mxu0 0.0
        %685 = vmatpush1.msra.mxu0 %v582
        %686 = vmatprep.subr.mxu0 0.0
        %687 = vmatpush1.msra.mxu0 %v593
        %688 = vmatprep.subr.mxu0 0.0
        %689 = vmatpush1.msra.mxu0 0.0
        %690 = vmatprep.subr.mxu0 0.0
        %691 = vmatpush1.msra.mxu0 0.0
        %692 = vmatprep.subr.mxu0 0.0
        %693 = vmatpush1.msra.mxu0 0.0
        %694 = vmatprep.subr.mxu0 0.0
        %695 = vmatpush1.msra.mxu0 0.0
        %696 = vmatprep.subr.mxu0 0.0
        %697 = vmatpush1.msra.mxu0 0.0
        %698 = vmatprep.subr.mxu0 0.0
        %699 = vmatpush1.msra.mxu0 0.0
        %700 = vmatprep.subr.mxu0 0.0
        %701 = vmatpush1.msra.mxu0 0.0
        %702 = vmatprep.subr.mxu0 0.0
        %703 = vmatpush1.msra.mxu0 0.0
        %704 = vmatprep.subr.mxu0 0.0
        %705 = vmatpush1.msra.mxu0 0.0
        %706 = vmatprep.subr.mxu0 0.0
        %707 = vmatpush1.msra.mxu0 0.0
        %708 = vmatprep.subr.mxu0 0.0
        %709 = vmatpush1.msra.mxu0 0.0
        %710 = vmatprep.subr.mxu0 0.0
        %711 = vmatpush1.msra.mxu0 0.0
        %712 = vmatprep.subr.mxu0 0.0
        %713 = vmatpush1.msra.mxu0 0.0
        %714 = vmatprep.subr.mxu0 0.0
        %715 = vmatpush1.msra.mxu0 0.0
        %716 = vmatprep.subr.mxu0 0.0
        %717 = vmatpush1.msra.mxu0 0.0
        %718 = vmatprep.subr.mxu0 0.0
        %719 = vmatpush1.msra.mxu0 0.0
        %720 = vmatprep.subr.mxu0 0.0
        %721 = vmatpush1.msra.mxu0 0.0
        %722 = vmatprep.subr.mxu0 0.0
        %723 = vmatpush1.msra.mxu0 0.0
        %724 = vmatprep.subr.mxu0 0.0
        %725 = vmatpush1.msra.mxu0 0.0
        %726 = vmatprep.subr.mxu0 0.0
        %727 = vmatpush1.msra.mxu0 0.0
        %728 = vmatprep.subr.mxu0 0.0
        %729 = vmatpush1.msra.mxu0 0.0
        %730 = vmatprep.subr.mxu0 0.0
        %731 = vmatpush1.msra.mxu0 0.0
        %732 = vmatprep.subr.mxu0 0.0
        %733 = vmatpush1.msra.mxu0 0.0
        %734 = vmatprep.mubr.f32.mxu0 0.0
        %735 = vmatmul.mubr.f32.gmra.mrb[0].mxu0 %v310
        %v736 = vpop.f32.mrb[0].mxu0
        %v737 = vadd.f32 %v306, %v736
        %v738 = vpop.f32.mrb[0].mxu0
        %739 = vdwg.mxu0
        %v743 = vcombine.low %v666, %v668
        %v745 = vunpack.c.l.s4 1966171168
        %v746 = vunpack.c.0.s8 %v745
        %v747 = vlaneseq
        %v748 = vshrl.u32 %v747, 7
        %v749 = vsub.s32 %v746, %v748
        %v750 = vrot.slane %v743, %v749
        %v752 = vunpack.c.l.s4 1966171168
        %v753 = vunpack.c.0.s8 %v752
        %v754 = vlaneseq
        %v755 = vshrl.u32 %v754, 7
        %v756 = vsub.s32 %v753, %v755
        %v757 = vrot.slane %v737, %v756
        %v758 = vcombine.low %v750, %v757
        %v759 = vcombine.high %v750, %v757
        %v761 = vunpack.c.l.s4 1966171168
        %v762 = vunpack.c.0.s8 %v761
        %v763 = vlaneseq
        %v764 = vshrl.u32 %v763, 7
        %v765 = vsub.s32 %v762, %v764
        %v766 = vrot.slane %v758, %v765
        %v768 = vunpack.c.l.s4 1966171168
        %v769 = vunpack.c.0.s8 %v768
        %v770 = vlaneseq
        %v771 = vshrl.u32 %v770, 7
        %v772 = vsub.s32 %v769, %v771
        %v773 = vrot.slane %v759, %v772
        %s776 = scalar_lea.vmem %s190, 1
        %777 = vst.msk [vmem:[%s776] ss:$4 sm:$0x7] %vm492, %v766
        %s778 = scalar_lea.vmem %s190, 13
        %779 = vst.msk [vmem:[%s778] ss:$4 sm:$0x7] %vm492, %v773
        %s780 = scalar_lea.vmem %s163, 24 [#allocation2]
        %v781 = vld [vmem:[%s780] sm:$0xff]
        %v782 = vld [vmem:[%s780 + $0x8] sm:$0xf]
        %v783 = vld [vmem:[%s780 + $0xc] sm:$0xff]
        %v784 = vld [vmem:[%s780 + $0x14] sm:$0xf]
        %v789 = vcombine.low %v781, %v783
        %v790 = vcombine.high %v781, %v783
        %v791 = vcombine.low %v782, %v784
        %795 = vrot.lane.b32.xlu0 %v789, 127
        %v796 = vpop.permute.xlu0 %795
        %797 = vrot.lane.b32.xlu0 %v790, 127
        %v798 = vpop.permute.xlu0 %797
        %799 = vrot.lane.b32.xlu0 %v791, 127
        %v800 = vpop.permute.xlu0 %799
        %v801 = vsel %vm213, %v796, %v798
        %v802 = vsel %vm213, %v798, %v800
        %806 = vrot.lane.b32.xlu0 %v789, 126
        %v807 = vpop.permute.xlu0 %806
        %808 = vrot.lane.b32.xlu0 %v790, 126
        %v809 = vpop.permute.xlu0 %808
        %810 = vrot.lane.b32.xlu0 %v791, 126
        %v811 = vpop.permute.xlu0 %810
        %v812 = vsel %vm225, %v807, %v809
        %v813 = vsel %vm225, %v809, %v811
        %817 = vrot.lane.b32.xlu0 %v789, 110
        %v818 = vpop.permute.xlu0 %817
        %819 = vrot.lane.b32.xlu0 %v790, 110
        %v820 = vpop.permute.xlu0 %819
        %821 = vrot.lane.b32.xlu0 %v791, 110
        %v822 = vpop.permute.xlu0 %821
        %v823 = vsel %vm237, %v818, %v820
        %v824 = vsel %vm237, %v820, %v822
        %828 = vrot.lane.b32.xlu0 %v789, 109
        %v829 = vpop.permute.xlu0 %828
        %830 = vrot.lane.b32.xlu0 %v790, 109
        %v831 = vpop.permute.xlu0 %830
        %832 = vrot.lane.b32.xlu0 %v791, 109
        %v833 = vpop.permute.xlu0 %832
        %v834 = vsel %vm249, %v829, %v831
        %v835 = vsel %vm249, %v831, %v833
        %839 = vrot.lane.b32.xlu0 %v789, 108
        %v840 = vpop.permute.xlu0 %839
        %841 = vrot.lane.b32.xlu0 %v790, 108
        %v842 = vpop.permute.xlu0 %841
        %843 = vrot.lane.b32.xlu0 %v791, 108
        %v844 = vpop.permute.xlu0 %843
        %v845 = vsel %vm261, %v840, %v842
        %v846 = vsel %vm261, %v842, %v844
        %850 = vrot.lane.b32.xlu0 %v789, 92
        %v851 = vpop.permute.xlu0 %850
        %852 = vrot.lane.b32.xlu0 %v790, 92
        %v853 = vpop.permute.xlu0 %852
        %854 = vrot.lane.b32.xlu0 %v791, 92
        %v855 = vpop.permute.xlu0 %854
        %v856 = vsel %vm273, %v851, %v853
        %v857 = vsel %vm273, %v853, %v855
        %861 = vrot.lane.b32.xlu0 %v789, 91
        %v862 = vpop.permute.xlu0 %861
        %863 = vrot.lane.b32.xlu0 %v790, 91
        %v864 = vpop.permute.xlu0 %863
        %865 = vrot.lane.b32.xlu0 %v791, 91
        %v866 = vpop.permute.xlu0 %865
        %v867 = vsel %vm285, %v862, %v864
        %v868 = vsel %vm285, %v864, %v866
        %872 = vrot.lane.b32.xlu0 %v789, 90
        %v873 = vpop.permute.xlu0 %872
        %874 = vrot.lane.b32.xlu0 %v790, 90
        %v875 = vpop.permute.xlu0 %874
        %876 = vrot.lane.b32.xlu0 %v791, 90
        %v877 = vpop.permute.xlu0 %876
        %v878 = vsel %vm297, %v873, %v875
        %v879 = vsel %vm297, %v875, %v877
        %883 = vmatprep.subr.mxu0 %v790
        %884 = vmatpush1.msra.mxu0 %v789
        %885 = vmatprep.subr.mxu0 %v802
        %886 = vmatpush1.msra.mxu0 %v801
        %887 = vmatprep.subr.mxu0 %v813
        %888 = vmatpush1.msra.mxu0 %v812
        %889 = vmatprep.subr.mxu0 %v824
        %890 = vmatpush1.msra.mxu0 %v823
        %891 = vmatprep.subr.mxu0 %v835
        %892 = vmatpush1.msra.mxu0 %v834
        %893 = vmatprep.subr.mxu0 %v846
        %894 = vmatpush1.msra.mxu0 %v845
        %895 = vmatprep.subr.mxu0 %v857
        %896 = vmatpush1.msra.mxu0 %v856
        %897 = vmatprep.subr.mxu0 %v868
        %898 = vmatpush1.msra.mxu0 %v867
        %899 = vmatprep.subr.mxu0 %v879
        %900 = vmatpush1.msra.mxu0 %v878
        %901 = vmatprep.subr.mxu0 0.0
        %902 = vmatpush1.msra.mxu0 0.0
        %903 = vmatprep.subr.mxu0 0.0
        %904 = vmatpush1.msra.mxu0 0.0
        %905 = vmatprep.subr.mxu0 0.0
        %906 = vmatpush1.msra.mxu0 0.0
        %907 = vmatprep.subr.mxu0 0.0
        %908 = vmatpush1.msra.mxu0 0.0
        %909 = vmatprep.subr.mxu0 0.0
        %910 = vmatpush1.msra.mxu0 0.0
        %911 = vmatprep.subr.mxu0 0.0
        %912 = vmatpush1.msra.mxu0 0.0
        %913 = vmatprep.subr.mxu0 0.0
        %914 = vmatpush1.msra.mxu0 0.0
        %915 = vmatprep.subr.mxu0 0.0
        %916 = vmatpush1.msra.mxu0 0.0
        %917 = vmatprep.subr.mxu0 0.0
        %918 = vmatpush1.msra.mxu0 0.0
        %919 = vmatprep.subr.mxu0 0.0
        %920 = vmatpush1.msra.mxu0 0.0
        %921 = vmatprep.subr.mxu0 0.0
        %922 = vmatpush1.msra.mxu0 0.0
        %923 = vmatprep.subr.mxu0 0.0
        %924 = vmatpush1.msra.mxu0 0.0
        %925 = vmatprep.subr.mxu0 0.0
        %926 = vmatpush1.msra.mxu0 0.0
        %927 = vmatprep.subr.mxu0 0.0
        %928 = vmatpush1.msra.mxu0 0.0
        %929 = vmatprep.subr.mxu0 0.0
        %930 = vmatpush1.msra.mxu0 0.0
        %931 = vmatprep.subr.mxu0 0.0
        %932 = vmatpush1.msra.mxu0 0.0
        %933 = vmatprep.subr.mxu0 0.0
        %934 = vmatpush1.msra.mxu0 0.0
        %935 = vmatprep.subr.mxu0 0.0
        %936 = vmatpush1.msra.mxu0 0.0
        %937 = vmatprep.subr.mxu0 0.0
        %938 = vmatpush1.msra.mxu0 0.0
        %939 = vmatprep.subr.mxu0 0.0
        %940 = vmatpush1.msra.mxu0 0.0
        %941 = vmatprep.subr.mxu0 0.0
        %942 = vmatpush1.msra.mxu0 0.0
        %943 = vmatprep.subr.mxu0 0.0
        %944 = vmatpush1.msra.mxu0 0.0
        %945 = vmatprep.subr.mxu0 0.0
        %946 = vmatpush1.msra.mxu0 0.0
        %947 = vmatprep.mubr.f32.mxu0 0.0
        %948 = vmatmul.mubr.f32.gmra.mrb[0].mxu0 %v310
        %v949 = vpop.f32.mrb[0].mxu0
        %v950 = vadd.f32 %v306, %v949
        %v951 = vpop.f32.mrb[0].mxu0
        %v952 = vadd.f32 %v306, %v951
        %953 = vdwg.mxu0
        %954 = vmatprep.subr.mxu0 0.0
        %955 = vmatpush1.msra.mxu0 %v791
        %956 = vmatprep.subr.mxu0 0.0
        %957 = vmatpush1.msra.mxu0 %v800
        %958 = vmatprep.subr.mxu0 0.0
        %959 = vmatpush1.msra.mxu0 %v811
        %960 = vmatprep.subr.mxu0 0.0
        %961 = vmatpush1.msra.mxu0 %v822
        %962 = vmatprep.subr.mxu0 0.0
        %963 = vmatpush1.msra.mxu0 %v833
        %964 = vmatprep.subr.mxu0 0.0
        %965 = vmatpush1.msra.mxu0 %v844
        %966 = vmatprep.subr.mxu0 0.0
        %967 = vmatpush1.msra.mxu0 %v855
        %968 = vmatprep.subr.mxu0 0.0
        %969 = vmatpush1.msra.mxu0 %v866
        %970 = vmatprep.subr.mxu0 0.0
        %971 = vmatpush1.msra.mxu0 %v877
        %972 = vmatprep.subr.mxu0 0.0
        %973 = vmatpush1.msra.mxu0 0.0
        %974 = vmatprep.subr.mxu0 0.0
        %975 = vmatpush1.msra.mxu0 0.0
        %976 = vmatprep.subr.mxu0 0.0
        %977 = vmatpush1.msra.mxu0 0.0
        %978 = vmatprep.subr.mxu0 0.0
        %979 = vmatpush1.msra.mxu0 0.0
        %980 = vmatprep.subr.mxu0 0.0
        %981 = vmatpush1.msra.mxu0 0.0
        %982 = vmatprep.subr.mxu0 0.0
        %983 = vmatpush1.msra.mxu0 0.0
        %984 = vmatprep.subr.mxu0 0.0
        %985 = vmatpush1.msra.mxu0 0.0
        %986 = vmatprep.subr.mxu0 0.0
        %987 = vmatpush1.msra.mxu0 0.0
        %988 = vmatprep.subr.mxu0 0.0
        %989 = vmatpush1.msra.mxu0 0.0
        %990 = vmatprep.subr.mxu0 0.0
        %991 = vmatpush1.msra.mxu0 0.0
        %992 = vmatprep.subr.mxu0 0.0
        %993 = vmatpush1.msra.mxu0 0.0
        %994 = vmatprep.subr.mxu0 0.0
        %995 = vmatpush1.msra.mxu0 0.0
        %996 = vmatprep.subr.mxu0 0.0
        %997 = vmatpush1.msra.mxu0 0.0
        %998 = vmatprep.subr.mxu0 0.0
        %999 = vmatpush1.msra.mxu0 0.0
        %1000 = vmatprep.subr.mxu0 0.0
        %1001 = vmatpush1.msra.mxu0 0.0
        %1002 = vmatprep.subr.mxu0 0.0
        %1003 = vmatpush1.msra.mxu0 0.0
        %1004 = vmatprep.subr.mxu0 0.0
        %1005 = vmatpush1.msra.mxu0 0.0
        %1006 = vmatprep.subr.mxu0 0.0
        %1007 = vmatpush1.msra.mxu0 0.0
        %1008 = vmatprep.subr.mxu0 0.0
        %1009 = vmatpush1.msra.mxu0 0.0
        %1010 = vmatprep.subr.mxu0 0.0
        %1011 = vmatpush1.msra.mxu0 0.0
        %1012 = vmatprep.subr.mxu0 0.0
        %1013 = vmatpush1.msra.mxu0 0.0
        %1014 = vmatprep.subr.mxu0 0.0
        %1015 = vmatpush1.msra.mxu0 0.0
        %1016 = vmatprep.subr.mxu0 0.0
        %1017 = vmatpush1.msra.mxu0 0.0
        %1018 = vmatprep.mubr.f32.mxu0 0.0
        %1019 = vmatmul.mubr.f32.gmra.mrb[0].mxu0 %v310
        %v1020 = vpop.f32.mrb[0].mxu0
        %v1021 = vadd.f32 %v306, %v1020
        %v1022 = vpop.f32.mrb[0].mxu0
        %1023 = vdwg.mxu0
        %v1027 = vcombine.low %v950, %v952
        %v1029 = vunpack.c.l.s4 1966171168
        %v1030 = vunpack.c.0.s8 %v1029
        %v1031 = vlaneseq
        %v1032 = vshrl.u32 %v1031, 7
        %v1033 = vsub.s32 %v1030, %v1032
        %v1034 = vrot.slane %v1027, %v1033
        %v1036 = vunpack.c.l.s4 1966171168
        %v1037 = vunpack.c.0.s8 %v1036
        %v1038 = vlaneseq
        %v1039 = vshrl.u32 %v1038, 7
        %v1040 = vsub.s32 %v1037, %v1039
        %v1041 = vrot.slane %v1021, %v1040
        %v1042 = vcombine.low %v1034, %v1041
        %v1043 = vcombine.high %v1034, %v1041
        %v1045 = vunpack.c.l.s4 1966171168
        %v1046 = vunpack.c.0.s8 %v1045
        %v1047 = vlaneseq
        %v1048 = vshrl.u32 %v1047, 7
        %v1049 = vsub.s32 %v1046, %v1048
        %v1050 = vrot.slane %v1042, %v1049
        %v1052 = vunpack.c.l.s4 1966171168
        %v1053 = vunpack.c.0.s8 %v1052
        %v1054 = vlaneseq
        %v1055 = vshrl.u32 %v1054, 7
        %v1056 = vsub.s32 %v1053, %v1055
        %v1057 = vrot.slane %v1043, %v1056
        %s1060 = scalar_lea.vmem %s190, 2
        %1061 = vst.msk [vmem:[%s1060] ss:$4 sm:$0x7] %vm492, %v1050
        %s1062 = scalar_lea.vmem %s190, 14
        %1063 = vst.msk [vmem:[%s1062] ss:$4 sm:$0x7] %vm492, %v1057
        %p1064 = scmp.lt.s32.totalorder %s17, 1
        %s1065 = scalar_select %p1064, %s17, 1
        %s1066 = smul.addr %s1065, 6
        %s1067 = smul.addr %s1066, 4
        %s1068 = scalar_lea.vmem %s3, %s1067
        // Predicated region
        $region37: #{tpu_custom_call.1} parent=31 // pred_check
          %p1069 = pneg %p103
        $region38: #{tpu_custom_call.1} parent=31 // pred_check_branch
          %1071 = sbr.rel (%p1069) target = $region40
        $region39: #{tpu_custom_call.1} parent=31 // pred_region
          _
        $region40: #{tpu_custom_call.1} parent=31 // pred_fallthru
          _
      $region32: #{tpu_custom_call.1} parent=5 // pred_fallthru
        _
      %p1072 = scmp.le.s32.totalorder 2, %s12
      // Predicated region
      $region41: #{tpu_custom_call.1} parent=5 // pred_check
        %p1073 = pneg %p1072
      $region42: #{tpu_custom_call.1} parent=5 // pred_check_branch
        %1075 = sbr.rel (%p1073) target = $region44
      $region43: #{tpu_custom_call.1} parent=5 // pred_region
        %s1076 = ssub.s32 %s12, 2
        // Predicated region
        $region45: #{tpu_custom_call.1} parent=43 // pred_check
          %p1077 = pneg %p109
        $region46: #{tpu_custom_call.1} parent=43 // pred_check_branch
          %1079 = sbr.rel (%p1077) target = $region48
        $region47: #{tpu_custom_call.1} parent=43 // pred_region
          %p1080 = scmp.lt.s32.totalorder %s18, 1
          %s1081 = scalar_select %p1080, %s18, 1
          %s1082 = smul.addr %s1081, 6
          %s1083 = smul.addr %s1082, 4
          %s1084 = scalar_lea.vmem %s3, %s1083
        $region48: #{tpu_custom_call.1} parent=43 // pred_fallthru
          _
      $region44: #{tpu_custom_call.1} parent=5 // pred_fallthru
        _
    $region6: #{tpu_custom_call.1} parent=1 // loop_footer
      %s16 = sadd.s32 1, %s12
    $region7: #{tpu_custom_call.1} parent=1 // loop_footer_branch
      %11 = sbr.rel target = $region3
    $region8: #{tpu_custom_call.1} parent=1 // loop_exit
      _
    %1085 = vsyncpa [#allocation3], 1
    %s1086 = scalar_lea.sflag [#allocation3], 1
    %1087 = vsyncpa %s1086, 1

</llo_original>
